<compile_context>
chip_gen: v7x
topology: tpu7x:2x2x1
jax: 0.10.0
libtpu: 0.0.40
codegen_flags: <defaults>
</compile_context>

<pallas_src>
import functools

import jax
import jax.numpy as jnp
import numpy as np
from jax import lax
from jax.experimental import pallas as pl
from jax.experimental.pallas import tpu as pltpu


def attention_kernel(q_ref, c_ref, w_ref, s_ref, attn_ref, *, batch_block):
    # q_ref:    (B, S, H)  queries for this block of batch elements
    # c_ref:    (B, T, C)  contexts for this block of batch elements
    # w_ref:    (C, H)     shared W_a weight (constant index map -> fetched once)
    # s_ref:    (B, T, H)  output summaries s_t
    # attn_ref: (B, T, S)  output attention weights in lane-dense (T, S) layout
    w = w_ref[...]                                     # (C, H)

    # Small static batch loop (batch_block <= 2 at these shapes).
    # TODO(synk): at larger batch_block switch to lax.fori_loop(unroll=True) or a
    # second grid axis, and do the projection as a single (B*T, C) @ (C, H) matmul.
    for b in range(batch_block):
        q = q_ref[b]                                   # (S, H)
        c = c_ref[b]                                   # (T, C)

        # Project the (smaller) context side: cw[t,h] = sum_c c[t,c] * w[c,h].
        cw = jnp.dot(c, w, preferred_element_type=jnp.float32)        # (T, H)

        # Lane-dense score: score[t,s] = sum_h cw[t,h] * q[s,h].
        # S sits on the lane axis; NT contraction, no transposed copies.
        score = lax.dot_general(
            cw, q,
            dimension_numbers=(((1,), (1,)), ((), ())),
            preferred_element_type=jnp.float32)                       # (T, S)

        # Softmax over S (torch dim=1).  Exact division so the user-visible
        # attention weights sum to exactly 1 (the divide is free at this size).
        m = jnp.max(score, axis=-1, keepdims=True)
        e = jnp.exp(score - m)
        attn = e / jnp.sum(e, axis=-1, keepdims=True)                 # (T, S)

        # s_t[t,h] = sum_s attn[t,s] * q[s,h]: canonical NN MXU matmul thanks to
        # the (T, S) layout -- no transpose of the attention tile is ever needed.
        s_t = jnp.dot(attn, q, preferred_element_type=jnp.float32)    # (T, H)

        attn_ref[b] = attn.astype(attn_ref.dtype)
        s_ref[b] = s_t.astype(s_ref.dtype)


def _tensorcores_per_chip():
    """Best effort: 2 TensorCores per chip on v7x-class devices, else 1."""
    try:
        kind = jax.devices()[0].device_kind.lower()
    except Exception:
        return 1
    return 2 if "v7" in kind else 1


def _choose_batch_block(n, num_cores):
    """Grid is a sequential loop on 1 TC: keep grid=(1,) there.  On multi-TC
    chips keep >= num_cores 'parallel' grid steps so every core gets work."""
    if num_cores <= 1 or n < 2:
        return n
    for steps in range(num_cores, n + 1):
        if n % steps == 0:
            return n // steps
    return 1


def attention_forward(q, c_t, w_a, *, batch_block=None):
    """q: (N,S,H) f32, c_t: (N,T,C) f32, w_a: (C,H) f32
       -> (s_t (N,T,H), W_attn (N,S,T))  -- matches the PyTorch module."""
    N, S, H = q.shape
    _, T, C = c_t.shape
    assert c_t.shape[0] == N and w_a.shape == (C, H)

    if batch_block is None:
        batch_block = _choose_batch_block(N, _tensorcores_per_chip())
    assert N % batch_block == 0
    grid = (N // batch_block,)

    kernel = functools.partial(attention_kernel, batch_block=batch_block)

    cost = pl.CostEstimate(
        flops=2 * N * T * H * (C + 2 * S),
        transcendentals=N * T * S,
        bytes_accessed=4 * (N * S * H + N * T * C + C * H + N * T * H + N * T * S),
    )

    grid_spec = pltpu.PrefetchScalarGridSpec(
        num_scalar_prefetch=0,
        grid=grid,
        in_specs=[
            pl.BlockSpec((batch_block, S, H), lambda g: (g, 0, 0)),
            pl.BlockSpec((batch_block, T, C), lambda g: (g, 0, 0)),
            pl.BlockSpec((C, H), lambda g: (0, 0)),   # constant -> fetched once
        ],
        out_specs=[
            pl.BlockSpec((batch_block, T, H), lambda g: (g, 0, 0)),
            pl.BlockSpec((batch_block, T, S), lambda g: (g, 0, 0)),
        ],
    )

    s_t, attn_ts = pl.pallas_call(
        kernel,
        grid_spec=grid_spec,
        out_shape=(
            jax.ShapeDtypeStruct((N, T, H), jnp.float32),
            jax.ShapeDtypeStruct((N, T, S), jnp.float32),
        ),
        compiler_params=pltpu.CompilerParams(
            dimension_semantics=("parallel",),
            vmem_limit_bytes=32 * 1024 * 1024,
        ),
        cost_estimate=cost,
    )(q, c_t, w_a)

    # Module API: W_attn is (N, S, T); kernel emits the lane-dense (N, T, S)
    # layout, transpose outside the kernel (cheap XLA op on a tiny array).
    w_attn = jnp.swapaxes(attn_ts, 1, 2)
    return s_t, w_attn


def attention_reference(q, c_t, w_a):
    qw = jnp.einsum("nsh,ch->nsc", q, w_a)            # nn.Linear: q @ W^T
    score = jnp.einsum("nsc,ntc->nst", qw, c_t)
    w_attn = jax.nn.softmax(score, axis=1)
    s_t = jnp.einsum("nst,nsh->nth", w_attn, q)
    return s_t, w_attn


if __name__ == "__main__":
    # Literal inputs from the module file (deterministic).
    c_t = jnp.array(
        [[[0.74, 0.34, 0.8, 0.66], [0.92, 0.05, 0.17, 0.77], [0.09, 0.5, 0.83, 0.97]],
         [[0.5, 0.04, 0.09, 0.23], [0.24, 0.25, 0.92, 0.59], [0.37, 0.39, 0.56, 0.12]]],
        dtype=jnp.float32)                      # (N=2, T=3, C=4)
    q = jnp.array(
        [[[0.26, 0.56, 0.29, 0.67, 0.81], [0.59, 0.4, 0.53, 0.68, 0.52],
          [0.55, 0.88, 0.55, 0.16, 0.62], [0.57, 0.63, 0.2, 0.65, 0.22],
          [0.2, 0.42, 0.11, 0.59, 0.46], [0.39, 0.53, 0.58, 0.29, 0.96],
          [0.06, 0.9, 0.58, 0.61, 0.22], [0.48, 0.3, 0.12, 0.86, 0.16],
          [0.14, 0.66, 0.99, 0.82, 0.8]],
         [[0.65, 0.94, 0.25, 0.5, 0.25], [0.22, 0.6, 0.62, 0.34, 0.77],
          [0.09, 0.56, 0.29, 0.43, 0.94], [0.8, 0.95, 0.81, 0.54, 0.46],
          [0.58, 0.77, 0.35, 0.08, 0.76], [0.46, 0.76, 0.28, 0.78, 0.41],
          [0.41, 0.5, 0.28, 0.62, 0.73], [0.4, 0.95, 0.89, 0.77, 0.81],
          [0.74, 0.53, 0.67, 0.25, 0.26]]],
        dtype=jnp.float32)                      # (N=2, S=9, H=5)

    query_size = q.shape[-1]      # 5
    context_size = c_t.shape[-1]  # 4

    # Deterministic W_a init (nn.Linear weight shape (out, in) = (C, H)).
    key = jax.random.PRNGKey(0)
    bound = 1.0 / np.sqrt(query_size)
    w_a = jax.random.uniform(
        key, (context_size, query_size), dtype=jnp.float32,
        minval=-bound, maxval=bound)

    s_t, w_attn = attention_forward(q, c_t, w_a)
    s_t, w_attn = jax.block_until_ready((s_t, w_attn))

    s_ref, w_ref = attention_reference(q, c_t, w_a)
    # Exact softmax division in the kernel -> tight tolerances again.
    np.testing.assert_allclose(np.asarray(s_t), np.asarray(s_ref),
                               rtol=1e-5, atol=1e-5)
    np.testing.assert_allclose(np.asarray(w_attn), np.asarray(w_ref),
                               rtol=1e-5, atol=1e-5)
    # Attention weights must sum to exactly ~1 over S (torch dim=1).
    np.testing.assert_allclose(np.asarray(jnp.sum(w_attn, axis=1)),
                               np.ones((q.shape[0], c_t.shape[1])),
                               rtol=1e-6, atol=1e-6)

    print("KERNEL_OK")
</pallas_src>

<mosaic_0001>
module attributes {stable_mosaic.version = 11 : i64} {
  func.func @attention_kernel(%arg0: i32, %arg1: memref<2x9x5xf32, #tpu.memory_space<vmem>>, %arg2: memref<2x3x4xf32, #tpu.memory_space<vmem>>, %arg3: memref<4x5xf32, #tpu.memory_space<vmem>>, %arg4: memref<2x3x5xf32, #tpu.memory_space<vmem>>, %arg5: memref<2x3x9xf32, #tpu.memory_space<vmem>>) attributes {dimension_semantics = [#tpu.dimension_semantics<parallel>], iteration_bounds = array<i64: 1>, scalar_prefetch = 0 : i64, scratch_operands = 0 : i64, tpu.core_type = #tpu.core_type<tc>, window_params = [{transform_indices = @transform_0, window_bounds = array<i64: 2, 9, 5>}, {transform_indices = @transform_1, window_bounds = array<i64: 2, 3, 4>}, {pipeline_mode = #tpu.pipeline_mode<synchronous>, transform_indices = @transform_2, window_bounds = array<i64: 4, 5>}, {transform_indices = @transform_3, window_bounds = array<i64: 2, 3, 5>}, {transform_indices = @transform_4, window_bounds = array<i64: 2, 3, 9>}]} {
    %c0 = arith.constant 0 : index
    %c0_0 = arith.constant 0 : index
    %0 = vector.load %arg3[%c0, %c0_0] : memref<4x5xf32, #tpu.memory_space<vmem>>, vector<4x5xf32>
    %c0_1 = arith.constant 0 : index
    %c0_2 = arith.constant 0 : index
    %c0_3 = arith.constant 0 : index
    %1 = vector.load %arg1[%c0_1, %c0_2, %c0_3] : memref<2x9x5xf32, #tpu.memory_space<vmem>>, vector<1x9x5xf32>
    %2 = vector.shape_cast %1 : vector<1x9x5xf32> to vector<9x5xf32>
    %c0_4 = arith.constant 0 : index
    %c0_5 = arith.constant 0 : index
    %c0_6 = arith.constant 0 : index
    %3 = vector.load %arg2[%c0_4, %c0_5, %c0_6] : memref<2x3x4xf32, #tpu.memory_space<vmem>>, vector<1x3x4xf32>
    %4 = vector.shape_cast %3 : vector<1x3x4xf32> to vector<3x4xf32>
    %cst = arith.constant dense<0.000000e+00> : vector<3x5xf32>
    %5 = tpu.matmul %4, %0, %cst {dimension_numbers = #tpu.dot_dimension_numbers<[1], [0], [0], [1], [0, 0, 1, 1], [], []>} : vector<3x4xf32>, vector<4x5xf32>, vector<3x5xf32> -> vector<3x5xf32>
    %cst_7 = arith.constant dense<0.000000e+00> : vector<3x9xf32>
    %6 = tpu.matmul %5, %2, %cst_7 {dimension_numbers = #tpu.dot_dimension_numbers<[1], [1], [0], [0], [0, 0, 1, 0], [], []>} : vector<3x5xf32>, vector<9x5xf32>, vector<3x9xf32> -> vector<3x9xf32>
    %cst_8 = arith.constant dense<0xFF800000> : vector<3xf32>
    %7 = vector.multi_reduction <maximumf>, %6, %cst_8 [1] : vector<3x9xf32> to vector<3xf32>
    %8 = vector.shape_cast %7 : vector<3xf32> to vector<3x1xf32>
    %9 = vector.broadcast %8 : vector<3x1xf32> to vector<3x9xf32>
    %10 = arith.subf %6, %9 : vector<3x9xf32>
    %11 = math.exp %10 : vector<3x9xf32>
    %cst_9 = arith.constant dense<0.000000e+00> : vector<3xf32>
    %12 = vector.multi_reduction <add>, %11, %cst_9 [1] : vector<3x9xf32> to vector<3xf32>
    %13 = vector.shape_cast %12 : vector<3xf32> to vector<3x1xf32>
    %14 = vector.broadcast %13 : vector<3x1xf32> to vector<3x9xf32>
    %15 = arith.divf %11, %14 : vector<3x9xf32>
    %cst_10 = arith.constant dense<0.000000e+00> : vector<3x5xf32>
    %16 = tpu.matmul %15, %2, %cst_10 {dimension_numbers = #tpu.dot_dimension_numbers<[1], [0], [0], [1], [0, 0, 1, 1], [], []>} : vector<3x9xf32>, vector<9x5xf32>, vector<3x5xf32> -> vector<3x5xf32>
    %c0_11 = arith.constant 0 : index
    %c0_12 = arith.constant 0 : index
    %c0_13 = arith.constant 0 : index
    %17 = vector.load %arg5[%c0_11, %c0_12, %c0_13] : memref<2x3x9xf32, #tpu.memory_space<vmem>>, vector<1x3x9xf32>
    %18 = vector.shape_cast %17 : vector<1x3x9xf32> to vector<3x9xf32>
    %19 = vector.shape_cast %15 : vector<3x9xf32> to vector<1x3x9xf32>
    tpu.vector_store %arg5[%c0_11, %c0_12, %c0_13], %19 {strides = array<i32>} : memref<2x3x9xf32, #tpu.memory_space<vmem>>, vector<1x3x9xf32>,
    %c0_14 = arith.constant 0 : index
    %c0_15 = arith.constant 0 : index
    %c0_16 = arith.constant 0 : index
    %20 = vector.load %arg4[%c0_14, %c0_15, %c0_16] : memref<2x3x5xf32, #tpu.memory_space<vmem>>, vector<1x3x5xf32>
    %21 = vector.shape_cast %20 : vector<1x3x5xf32> to vector<3x5xf32>
    %22 = vector.shape_cast %16 : vector<3x5xf32> to vector<1x3x5xf32>
    tpu.vector_store %arg4[%c0_14, %c0_15, %c0_16], %22 {strides = array<i32>} : memref<2x3x5xf32, #tpu.memory_space<vmem>>, vector<1x3x5xf32>,
    %c1 = arith.constant 1 : index
    %c0_17 = arith.constant 0 : index
    %c0_18 = arith.constant 0 : index
    %23 = vector.load %arg1[%c1, %c0_17, %c0_18] : memref<2x9x5xf32, #tpu.memory_space<vmem>>, vector<1x9x5xf32>
    %24 = vector.shape_cast %23 : vector<1x9x5xf32> to vector<9x5xf32>
    %c1_19 = arith.constant 1 : index
    %c0_20 = arith.constant 0 : index
    %c0_21 = arith.constant 0 : index
    %25 = vector.load %arg2[%c1_19, %c0_20, %c0_21] : memref<2x3x4xf32, #tpu.memory_space<vmem>>, vector<1x3x4xf32>
    %26 = vector.shape_cast %25 : vector<1x3x4xf32> to vector<3x4xf32>
    %cst_22 = arith.constant dense<0.000000e+00> : vector<3x5xf32>
    %27 = tpu.matmul %26, %0, %cst_22 {dimension_numbers = #tpu.dot_dimension_numbers<[1], [0], [0], [1], [0, 0, 1, 1], [], []>} : vector<3x4xf32>, vector<4x5xf32>, vector<3x5xf32> -> vector<3x5xf32>
    %cst_23 = arith.constant dense<0.000000e+00> : vector<3x9xf32>
    %28 = tpu.matmul %27, %24, %cst_23 {dimension_numbers = #tpu.dot_dimension_numbers<[1], [1], [0], [0], [0, 0, 1, 0], [], []>} : vector<3x5xf32>, vector<9x5xf32>, vector<3x9xf32> -> vector<3x9xf32>
    %cst_24 = arith.constant dense<0xFF800000> : vector<3xf32>
    %29 = vector.multi_reduction <maximumf>, %28, %cst_24 [1] : vector<3x9xf32> to vector<3xf32>
    %30 = vector.shape_cast %29 : vector<3xf32> to vector<3x1xf32>
    %31 = vector.broadcast %30 : vector<3x1xf32> to vector<3x9xf32>
    %32 = arith.subf %28, %31 : vector<3x9xf32>
    %33 = math.exp %32 : vector<3x9xf32>
    %cst_25 = arith.constant dense<0.000000e+00> : vector<3xf32>
    %34 = vector.multi_reduction <add>, %33, %cst_25 [1] : vector<3x9xf32> to vector<3xf32>
    %35 = vector.shape_cast %34 : vector<3xf32> to vector<3x1xf32>
    %36 = vector.broadcast %35 : vector<3x1xf32> to vector<3x9xf32>
    %37 = arith.divf %33, %36 : vector<3x9xf32>
    %cst_26 = arith.constant dense<0.000000e+00> : vector<3x5xf32>
    %38 = tpu.matmul %37, %24, %cst_26 {dimension_numbers = #tpu.dot_dimension_numbers<[1], [0], [0], [1], [0, 0, 1, 1], [], []>} : vector<3x9xf32>, vector<9x5xf32>, vector<3x5xf32> -> vector<3x5xf32>
    %c1_27 = arith.constant 1 : index
    %c0_28 = arith.constant 0 : index
    %c0_29 = arith.constant 0 : index
    %39 = vector.load %arg5[%c1_27, %c0_28, %c0_29] : memref<2x3x9xf32, #tpu.memory_space<vmem>>, vector<1x3x9xf32>
    %40 = vector.shape_cast %39 : vector<1x3x9xf32> to vector<3x9xf32>
    %41 = vector.shape_cast %37 : vector<3x9xf32> to vector<1x3x9xf32>
    tpu.vector_store %arg5[%c1_27, %c0_28, %c0_29], %41 {strides = array<i32>} : memref<2x3x9xf32, #tpu.memory_space<vmem>>, vector<1x3x9xf32>,
    %c1_30 = arith.constant 1 : index
    %c0_31 = arith.constant 0 : index
    %c0_32 = arith.constant 0 : index
    %42 = vector.load %arg4[%c1_30, %c0_31, %c0_32] : memref<2x3x5xf32, #tpu.memory_space<vmem>>, vector<1x3x5xf32>
    %43 = vector.shape_cast %42 : vector<1x3x5xf32> to vector<3x5xf32>
    %44 = vector.shape_cast %38 : vector<3x5xf32> to vector<1x3x5xf32>
    tpu.vector_store %arg4[%c1_30, %c0_31, %c0_32], %44 {strides = array<i32>} : memref<2x3x5xf32, #tpu.memory_space<vmem>>, vector<1x3x5xf32>,
    return
  }
  func.func @transform_0(%arg0: i32) -> (i32, i32, i32) {
    %c0_i32 = arith.constant 0 : i32
    %c0_i32_0 = arith.constant 0 : i32
    %c0_i32_1 = arith.constant 0 : i32
    return %arg0, %c0_i32, %c0_i32_0 : i32, i32, i32
  }
  func.func @transform_1(%arg0: i32) -> (i32, i32, i32) {
    %c0_i32 = arith.constant 0 : i32
    %c0_i32_0 = arith.constant 0 : i32
    %c0_i32_1 = arith.constant 0 : i32
    return %arg0, %c0_i32, %c0_i32_0 : i32, i32, i32
  }
  func.func @transform_2(%arg0: i32) -> (i32, i32) {
    %c0_i32 = arith.constant 0 : i32
    %c0_i32_0 = arith.constant 0 : i32
    %c0_i32_1 = arith.constant 0 : i32
    return %c0_i32, %c0_i32_0 : i32, i32
  }
  func.func @transform_3(%arg0: i32) -> (i32, i32, i32) {
    %c0_i32 = arith.constant 0 : i32
    %c0_i32_0 = arith.constant 0 : i32
    %c0_i32_1 = arith.constant 0 : i32
    return %arg0, %c0_i32, %c0_i32_0 : i32, i32, i32
  }
  func.func @transform_4(%arg0: i32) -> (i32, i32, i32) {
    %c0_i32 = arith.constant 0 : i32
    %c0_i32_0 = arith.constant 0 : i32
    %c0_i32_1 = arith.constant 0 : i32
    return %arg0, %c0_i32, %c0_i32_0 : i32, i32, i32
  }
}

</mosaic_0001>

<llo_original>
// kernel: tpu_custom_call.1
$region0: #{tpu_custom_call.1}
  #allocation0 [shape = 'u32[]', space=smem, size = 0x4, offset = 0x4, fixed_abs, tag = 'smem constant byte address 0x4 - core index']
  #allocation1 [shape = 'u32[144,128]{1,0:T(1,128)}', space=vmem, size = 0x12000, scoped, tag = 'internal scratch']
  %s0 = inlined_call_operand.vmem [shape: f32[2,9,5], index: 0, kind: input, shape index: {}]
  %s1 = inlined_call_operand.vmem [shape: f32[2,3,4], index: 1, kind: input, shape index: {}]
  %s2 = inlined_call_operand.vmem [shape: f32[4,5], index: 2, kind: input, shape index: {}]
  %s3 = inlined_call_operand.vmem [shape: f32[2,3,5], index: 3, kind: output, shape index: {0}]
  %s4 = inlined_call_operand.vmem [shape: f32[2,3,9], index: 4, kind: output, shape index: {1}]
  %5 = xla_tuple %s3, %s4
  %s6 = sld [smem:[#allocation0]]
  $region30: #{tpu_custom_call.1} parent=0
    _
  %s8 = ssub.s32 1, %s6
  %s9 = scalar_select 0, %s8, %s6
  // Predicated region
  $region2: #{tpu_custom_call.1} parent=0 // pred_check
    _
  $region3: #{tpu_custom_call.1} parent=0 // pred_check_branch
    %11 = sbr.rel (0) target = $region5
  $region4: #{tpu_custom_call.1} parent=0 // pred_region
    _
  $region5: #{tpu_custom_call.1} parent=0 // pred_fallthru
    _
  // Predicated region
  $region6: #{tpu_custom_call.1} parent=0 // pred_check
    _
  $region7: #{tpu_custom_call.1} parent=0 // pred_check_branch
    %13 = sbr.rel (0) target = $region9
  $region8: #{tpu_custom_call.1} parent=0 // pred_region
    _
  $region9: #{tpu_custom_call.1} parent=0 // pred_fallthru
    _
  // Predicated region
  $region10: #{tpu_custom_call.1} parent=0 // pred_check
    _
  $region11: #{tpu_custom_call.1} parent=0 // pred_check_branch
    %15 = sbr.rel (0) target = $region13
  $region12: #{tpu_custom_call.1} parent=0 // pred_region
    _
  $region13: #{tpu_custom_call.1} parent=0 // pred_fallthru
    _
  %v16 = vld [vmem:[%s2] sm:$0xf]
  %v17 = vld [vmem:[%s0] sm:$0xff]
  %v18 = vld [vmem:[%s0 + $0x8] sm:$0x1]
  %v19 = vld [vmem:[%s1] sm:$0x7]
  %vm20 = vcmask 31744
  %v22 = vsel %vm20, %v19, 0
  %vm24 = vcmask 1043456
  %v26 = vsel %vm24, %v16, 0
  %28 = vmatprep.subr.mxu0 0.0
  %29 = vmatpush1.msra.mxu0 %v26
  %30 = vmatprep.subr.mxu0 0.0
  %31 = vmatpush1.msra.mxu0 0.0
  %32 = vmatprep.subr.mxu0 0.0
  %33 = vmatpush1.msra.mxu0 0.0
  %34 = vmatprep.subr.mxu0 0.0
  %35 = vmatpush1.msra.mxu0 0.0
  %36 = vmatprep.subr.mxu0 0.0
  %37 = vmatpush1.msra.mxu0 0.0
  %38 = vmatprep.subr.mxu0 0.0
  %39 = vmatpush1.msra.mxu0 0.0
  %40 = vmatprep.subr.mxu0 0.0
  %41 = vmatpush1.msra.mxu0 0.0
  %42 = vmatprep.subr.mxu0 0.0
  %43 = vmatpush1.msra.mxu0 0.0
  %44 = vmatprep.subr.mxu0 0.0
  %45 = vmatpush1.msra.mxu0 0.0
  %46 = vmatprep.subr.mxu0 0.0
  %47 = vmatpush1.msra.mxu0 0.0
  %48 = vmatprep.subr.mxu0 0.0
  %49 = vmatpush1.msra.mxu0 0.0
  %50 = vmatprep.subr.mxu0 0.0
  %51 = vmatpush1.msra.mxu0 0.0
  %52 = vmatprep.subr.mxu0 0.0
  %53 = vmatpush1.msra.mxu0 0.0
  %54 = vmatprep.subr.mxu0 0.0
  %55 = vmatpush1.msra.mxu0 0.0
  %56 = vmatprep.subr.mxu0 0.0
  %57 = vmatpush1.msra.mxu0 0.0
  %58 = vmatprep.subr.mxu0 0.0
  %59 = vmatpush1.msra.mxu0 0.0
  %60 = vmatprep.subr.mxu0 0.0
  %61 = vmatpush1.msra.mxu0 0.0
  %62 = vmatprep.subr.mxu0 0.0
  %63 = vmatpush1.msra.mxu0 0.0
  %64 = vmatprep.subr.mxu0 0.0
  %65 = vmatpush1.msra.mxu0 0.0
  %66 = vmatprep.subr.mxu0 0.0
  %67 = vmatpush1.msra.mxu0 0.0
  %68 = vmatprep.subr.mxu0 0.0
  %69 = vmatpush1.msra.mxu0 0.0
  %70 = vmatprep.subr.mxu0 0.0
  %71 = vmatpush1.msra.mxu0 0.0
  %72 = vmatprep.subr.mxu0 0.0
  %73 = vmatpush1.msra.mxu0 0.0
  %74 = vmatprep.subr.mxu0 0.0
  %75 = vmatpush1.msra.mxu0 0.0
  %76 = vmatprep.subr.mxu0 0.0
  %77 = vmatpush1.msra.mxu0 0.0
  %78 = vmatprep.subr.mxu0 0.0
  %79 = vmatpush1.msra.mxu0 0.0
  %80 = vmatprep.subr.mxu0 0.0
  %81 = vmatpush1.msra.mxu0 0.0
  %82 = vmatprep.subr.mxu0 0.0
  %83 = vmatpush1.msra.mxu0 0.0
  %84 = vmatprep.subr.mxu0 0.0
  %85 = vmatpush1.msra.mxu0 0.0
  %86 = vmatprep.subr.mxu0 0.0
  %87 = vmatpush1.msra.mxu0 0.0
  %88 = vmatprep.subr.mxu0 0.0
  %89 = vmatpush1.msra.mxu0 0.0
  %90 = vmatprep.subr.mxu0 0.0
  %91 = vmatpush1.msra.mxu0 0.0
  %92 = vmatprep.mubr.f32.mxu0 0.0
  %93 = vmatmul.mubr.f32.gmra.mrb[0].mxu0 %v22
  %v94 = vpop.f32.mrb[0].mxu0
  %v95 = vadd.f32 0.0, %v94
  %v96 = vpop.f32.mrb[0].mxu0
  %97 = vdwg.mxu0
  %vm98 = vcmask 39936
  %v100 = vsel %vm98, %v95, 0
  %v103 = vsel %vm98, %v17, 0
  %v106 = vsel %vm98, %v18, 0
  %108 = vmatprep.subr.mxu0 0.0
  %109 = vmatpush1.xpose.msra.mxu0 %v103
  %110 = vmatprep.subr.mxu0 0.0
  %111 = vmatpush1.xpose.msra.mxu0 %v106
  %112 = vmatprep.subr.mxu0 0.0
  %113 = vmatpush1.xpose.msra.mxu0 0.0
  %114 = vmatprep.subr.mxu0 0.0
  %115 = vmatpush1.xpose.msra.mxu0 0.0
  %116 = vmatprep.subr.mxu0 0.0
  %117 = vmatpush1.xpose.msra.mxu0 0.0
  %118 = vmatprep.subr.mxu0 0.0
  %119 = vmatpush1.xpose.msra.mxu0 0.0
  %120 = vmatprep.subr.mxu0 0.0
  %121 = vmatpush1.xpose.msra.mxu0 0.0
  %122 = vmatprep.subr.mxu0 0.0
  %123 = vmatpush1.xpose.msra.mxu0 0.0
  %124 = vmatprep.subr.mxu0 0.0
  %125 = vmatpush1.xpose.msra.mxu0 0.0
  %126 = vmatprep.subr.mxu0 0.0
  %127 = vmatpush1.xpose.msra.mxu0 0.0
  %128 = vmatprep.subr.mxu0 0.0
  %129 = vmatpush1.xpose.msra.mxu0 0.0
  %130 = vmatprep.subr.mxu0 0.0
  %131 = vmatpush1.xpose.msra.mxu0 0.0
  %132 = vmatprep.subr.mxu0 0.0
  %133 = vmatpush1.xpose.msra.mxu0 0.0
  %134 = vmatprep.subr.mxu0 0.0
  %135 = vmatpush1.xpose.msra.mxu0 0.0
  %136 = vmatprep.subr.mxu0 0.0
  %137 = vmatpush1.xpose.msra.mxu0 0.0
  %138 = vmatprep.subr.mxu0 0.0
  %139 = vmatpush1.xpose.msra.mxu0 0.0
  %140 = vmatprep.subr.mxu0 0.0
  %141 = vmatpush1.xpose.msra.mxu0 0.0
  %142 = vmatprep.subr.mxu0 0.0
  %143 = vmatpush1.xpose.msra.mxu0 0.0
  %144 = vmatprep.subr.mxu0 0.0
  %145 = vmatpush1.xpose.msra.mxu0 0.0
  %146 = vmatprep.subr.mxu0 0.0
  %147 = vmatpush1.xpose.msra.mxu0 0.0
  %148 = vmatprep.subr.mxu0 0.0
  %149 = vmatpush1.xpose.msra.mxu0 0.0
  %150 = vmatprep.subr.mxu0 0.0
  %151 = vmatpush1.xpose.msra.mxu0 0.0
  %152 = vmatprep.subr.mxu0 0.0
  %153 = vmatpush1.xpose.msra.mxu0 0.0
  %154 = vmatprep.subr.mxu0 0.0
  %155 = vmatpush1.xpose.msra.mxu0 0.0
  %156 = vmatprep.subr.mxu0 0.0
  %157 = vmatpush1.xpose.msra.mxu0 0.0
  %158 = vmatprep.subr.mxu0 0.0
  %159 = vmatpush1.xpose.msra.mxu0 0.0
  %160 = vmatprep.subr.mxu0 0.0
  %161 = vmatpush1.xpose.msra.mxu0 0.0
  %162 = vmatprep.subr.mxu0 0.0
  %163 = vmatpush1.xpose.msra.mxu0 0.0
  %164 = vmatprep.subr.mxu0 0.0
  %165 = vmatpush1.xpose.msra.mxu0 0.0
  %166 = vmatprep.subr.mxu0 0.0
  %167 = vmatpush1.xpose.msra.mxu0 0.0
  %168 = vmatprep.subr.mxu0 0.0
  %169 = vmatpush1.xpose.msra.mxu0 0.0
  %170 = vmatprep.subr.mxu0 0.0
  %171 = vmatpush1.xpose.msra.mxu0 0.0
  %172 = vmatprep.mubr.f32.mxu0 0.0
  %173 = vmatmul.mubr.f32.gmra.mrb[0].mxu0 %v100
  %v174 = vpop.f32.mrb[0].mxu0
  %v175 = vadd.f32 0.0, %v174
  %v176 = vpop.f32.mrb[0].mxu0
  %177 = vdwg.mxu0
  %vm178 = vcmask 67584
  %v179 = vsel %vm178, %v175, -inf
  %180 = vmax.xlane.f32.xlu0 %v179
  %v181 = vpop.xlane.xlu0 %180
  %v182 = vsub.f32 %v175, %v181
  %v183 = vmul.f32 %v182, 1.442695
  %v184 = vpow.pop %v183
  %v185 = vsel %vm178, %v184, 0.0
  %186 = vadd.xlane.f32.xlu0 %v185
  %v187 = vpop.xlane.xlu0 %186
  %v188 = vrcp.pop %v187
  %v189 = vmul.f32 %v184, %v188
  %vm190 = vcmask 72704
  %v192 = vsel %vm190, %v189, 0
  %vm194 = vcmask 1040384
  %v195 = vsel %vm194, %v18, 0
  %197 = vmatprep.subr.mxu0 0.0
  %198 = vmatpush1.msra.mxu0 %v17
  %199 = vmatprep.subr.mxu0 0.0
  %200 = vmatpush1.msra.mxu0 %v195
  %201 = vmatprep.subr.mxu0 0.0
  %202 = vmatpush1.msra.mxu0 0.0
  %203 = vmatprep.subr.mxu0 0.0
  %204 = vmatpush1.msra.mxu0 0.0
  %205 = vmatprep.subr.mxu0 0.0
  %206 = vmatpush1.msra.mxu0 0.0
  %207 = vmatprep.subr.mxu0 0.0
  %208 = vmatpush1.msra.mxu0 0.0
  %209 = vmatprep.subr.mxu0 0.0
  %210 = vmatpush1.msra.mxu0 0.0
  %211 = vmatprep.subr.mxu0 0.0
  %212 = vmatpush1.msra.mxu0 0.0
  %213 = vmatprep.subr.mxu0 0.0
  %214 = vmatpush1.msra.mxu0 0.0
  %215 = vmatprep.subr.mxu0 0.0
  %216 = vmatpush1.msra.mxu0 0.0
  %217 = vmatprep.subr.mxu0 0.0
  %218 = vmatpush1.msra.mxu0 0.0
  %219 = vmatprep.subr.mxu0 0.0
  %220 = vmatpush1.msra.mxu0 0.0
  %221 = vmatprep.subr.mxu0 0.0
  %222 = vmatpush1.msra.mxu0 0.0
  %223 = vmatprep.subr.mxu0 0.0
  %224 = vmatpush1.msra.mxu0 0.0
  %225 = vmatprep.subr.mxu0 0.0
  %226 = vmatpush1.msra.mxu0 0.0
  %227 = vmatprep.subr.mxu0 0.0
  %228 = vmatpush1.msra.mxu0 0.0
  %229 = vmatprep.subr.mxu0 0.0
  %230 = vmatpush1.msra.mxu0 0.0
  %231 = vmatprep.subr.mxu0 0.0
  %232 = vmatpush1.msra.mxu0 0.0
  %233 = vmatprep.subr.mxu0 0.0
  %234 = vmatpush1.msra.mxu0 0.0
  %235 = vmatprep.subr.mxu0 0.0
  %236 = vmatpush1.msra.mxu0 0.0
  %237 = vmatprep.subr.mxu0 0.0
  %238 = vmatpush1.msra.mxu0 0.0
  %239 = vmatprep.subr.mxu0 0.0
  %240 = vmatpush1.msra.mxu0 0.0
  %241 = vmatprep.subr.mxu0 0.0
  %242 = vmatpush1.msra.mxu0 0.0
  %243 = vmatprep.subr.mxu0 0.0
  %244 = vmatpush1.msra.mxu0 0.0
  %245 = vmatprep.subr.mxu0 0.0
  %246 = vmatpush1.msra.mxu0 0.0
  %247 = vmatprep.subr.mxu0 0.0
  %248 = vmatpush1.msra.mxu0 0.0
  %249 = vmatprep.subr.mxu0 0.0
  %250 = vmatpush1.msra.mxu0 0.0
  %251 = vmatprep.subr.mxu0 0.0
  %252 = vmatpush1.msra.mxu0 0.0
  %253 = vmatprep.subr.mxu0 0.0
  %254 = vmatpush1.msra.mxu0 0.0
  %255 = vmatprep.subr.mxu0 0.0
  %256 = vmatpush1.msra.mxu0 0.0
  %257 = vmatprep.subr.mxu0 0.0
  %258 = vmatpush1.msra.mxu0 0.0
  %259 = vmatprep.subr.mxu0 0.0
  %260 = vmatpush1.msra.mxu0 0.0
  %261 = vmatprep.mubr.f32.mxu0 0.0
  %262 = vmatmul.mubr.f32.gmra.mrb[0].mxu0 %v192
  %v263 = vpop.f32.mrb[0].mxu0
  %v264 = vadd.f32 0.0, %v263
  %v265 = vpop.f32.mrb[0].mxu0
  %266 = vdwg.mxu0
  %267 = vst.msk [vmem:[%s4] sm:$0x7] %vm178, %v189
  %vm268 = vcmask 34816
  %269 = vst.msk [vmem:[%s3] sm:$0x7] %vm268, %v264
  %s270 = scalar_lea.vmem %s0, 16
  %v271 = vld [vmem:[%s270] sm:$0xff]
  %v272 = vld [vmem:[%s270 + $0x8] sm:$0x1]
  %s273 = scalar_lea.vmem %s1, 4
  %v274 = vld [vmem:[%s273] sm:$0x7]
  %v276 = vsel %vm20, %v274, 0
  %278 = vmatprep.subr.mxu0 0.0
  %279 = vmatpush1.msra.mxu0 %v26
  %280 = vmatprep.subr.mxu0 0.0
  %281 = vmatpush1.msra.mxu0 0.0
  %282 = vmatprep.subr.mxu0 0.0
  %283 = vmatpush1.msra.mxu0 0.0
  %284 = vmatprep.subr.mxu0 0.0
  %285 = vmatpush1.msra.mxu0 0.0
  %286 = vmatprep.subr.mxu0 0.0
  %287 = vmatpush1.msra.mxu0 0.0
  %288 = vmatprep.subr.mxu0 0.0
  %289 = vmatpush1.msra.mxu0 0.0
  %290 = vmatprep.subr.mxu0 0.0
  %291 = vmatpush1.msra.mxu0 0.0
  %292 = vmatprep.subr.mxu0 0.0
  %293 = vmatpush1.msra.mxu0 0.0
  %294 = vmatprep.subr.mxu0 0.0
  %295 = vmatpush1.msra.mxu0 0.0
  %296 = vmatprep.subr.mxu0 0.0
  %297 = vmatpush1.msra.mxu0 0.0
  %298 = vmatprep.subr.mxu0 0.0
  %299 = vmatpush1.msra.mxu0 0.0
  %300 = vmatprep.subr.mxu0 0.0
  %301 = vmatpush1.msra.mxu0 0.0
  %302 = vmatprep.subr.mxu0 0.0
  %303 = vmatpush1.msra.mxu0 0.0
  %304 = vmatprep.subr.mxu0 0.0
  %305 = vmatpush1.msra.mxu0 0.0
  %306 = vmatprep.subr.mxu0 0.0
  %307 = vmatpush1.msra.mxu0 0.0
  %308 = vmatprep.subr.mxu0 0.0
  %309 = vmatpush1.msra.mxu0 0.0
  %310 = vmatprep.subr.mxu0 0.0
  %311 = vmatpush1.msra.mxu0 0.0
  %312 = vmatprep.subr.mxu0 0.0
  %313 = vmatpush1.msra.mxu0 0.0
  %314 = vmatprep.subr.mxu0 0.0
  %315 = vmatpush1.msra.mxu0 0.0
  %316 = vmatprep.subr.mxu0 0.0
  %317 = vmatpush1.msra.mxu0 0.0
  %318 = vmatprep.subr.mxu0 0.0
  %319 = vmatpush1.msra.mxu0 0.0
  %320 = vmatprep.subr.mxu0 0.0
  %321 = vmatpush1.msra.mxu0 0.0
  %322 = vmatprep.subr.mxu0 0.0
  %323 = vmatpush1.msra.mxu0 0.0
  %324 = vmatprep.subr.mxu0 0.0
  %325 = vmatpush1.msra.mxu0 0.0
  %326 = vmatprep.subr.mxu0 0.0
  %327 = vmatpush1.msra.mxu0 0.0
  %328 = vmatprep.subr.mxu0 0.0
  %329 = vmatpush1.msra.mxu0 0.0
  %330 = vmatprep.subr.mxu0 0.0
  %331 = vmatpush1.msra.mxu0 0.0
  %332 = vmatprep.subr.mxu0 0.0
  %333 = vmatpush1.msra.mxu0 0.0
  %334 = vmatprep.subr.mxu0 0.0
  %335 = vmatpush1.msra.mxu0 0.0
  %336 = vmatprep.subr.mxu0 0.0
  %337 = vmatpush1.msra.mxu0 0.0
  %338 = vmatprep.subr.mxu0 0.0
  %339 = vmatpush1.msra.mxu0 0.0
  %340 = vmatprep.subr.mxu0 0.0
  %341 = vmatpush1.msra.mxu0 0.0
  %342 = vmatprep.mubr.f32.mxu0 0.0
  %343 = vmatmul.mubr.f32.gmra.mrb[0].mxu0 %v276
  %v344 = vpop.f32.mrb[0].mxu0
  %v345 = vadd.f32 0.0, %v344
  %v346 = vpop.f32.mrb[0].mxu0
  %347 = vdwg.mxu0
  %v349 = vsel %vm98, %v345, 0
  %v352 = vsel %vm98, %v271, 0
  %v355 = vsel %vm98, %v272, 0
  %357 = vmatprep.subr.mxu0 0.0
  %358 = vmatpush1.xpose.msra.mxu0 %v352
  %359 = vmatprep.subr.mxu0 0.0
  %360 = vmatpush1.xpose.msra.mxu0 %v355
  %361 = vmatprep.subr.mxu0 0.0
  %362 = vmatpush1.xpose.msra.mxu0 0.0
  %363 = vmatprep.subr.mxu0 0.0
  %364 = vmatpush1.xpose.msra.mxu0 0.0
  %365 = vmatprep.subr.mxu0 0.0
  %366 = vmatpush1.xpose.msra.mxu0 0.0
  %367 = vmatprep.subr.mxu0 0.0
  %368 = vmatpush1.xpose.msra.mxu0 0.0
  %369 = vmatprep.subr.mxu0 0.0
  %370 = vmatpush1.xpose.msra.mxu0 0.0
  %371 = vmatprep.subr.mxu0 0.0
  %372 = vmatpush1.xpose.msra.mxu0 0.0
  %373 = vmatprep.subr.mxu0 0.0
  %374 = vmatpush1.xpose.msra.mxu0 0.0
  %375 = vmatprep.subr.mxu0 0.0
  %376 = vmatpush1.xpose.msra.mxu0 0.0
  %377 = vmatprep.subr.mxu0 0.0
  %378 = vmatpush1.xpose.msra.mxu0 0.0
  %379 = vmatprep.subr.mxu0 0.0
  %380 = vmatpush1.xpose.msra.mxu0 0.0
  %381 = vmatprep.subr.mxu0 0.0
  %382 = vmatpush1.xpose.msra.mxu0 0.0
  %383 = vmatprep.subr.mxu0 0.0
  %384 = vmatpush1.xpose.msra.mxu0 0.0
  %385 = vmatprep.subr.mxu0 0.0
  %386 = vmatpush1.xpose.msra.mxu0 0.0
  %387 = vmatprep.subr.mxu0 0.0
  %388 = vmatpush1.xpose.msra.mxu0 0.0
  %389 = vmatprep.subr.mxu0 0.0
  %390 = vmatpush1.xpose.msra.mxu0 0.0
  %391 = vmatprep.subr.mxu0 0.0
  %392 = vmatpush1.xpose.msra.mxu0 0.0
  %393 = vmatprep.subr.mxu0 0.0
  %394 = vmatpush1.xpose.msra.mxu0 0.0
  %395 = vmatprep.subr.mxu0 0.0
  %396 = vmatpush1.xpose.msra.mxu0 0.0
  %397 = vmatprep.subr.mxu0 0.0
  %398 = vmatpush1.xpose.msra.mxu0 0.0
  %399 = vmatprep.subr.mxu0 0.0
  %400 = vmatpush1.xpose.msra.mxu0 0.0
  %401 = vmatprep.subr.mxu0 0.0
  %402 = vmatpush1.xpose.msra.mxu0 0.0
  %403 = vmatprep.subr.mxu0 0.0
  %404 = vmatpush1.xpose.msra.mxu0 0.0
  %405 = vmatprep.subr.mxu0 0.0
  %406 = vmatpush1.xpose.msra.mxu0 0.0
  %407 = vmatprep.subr.mxu0 0.0
  %408 = vmatpush1.xpose.msra.mxu0 0.0
  %409 = vmatprep.subr.mxu0 0.0
  %410 = vmatpush1.xpose.msra.mxu0 0.0
  %411 = vmatprep.subr.mxu0 0.0
  %412 = vmatpush1.xpose.msra.mxu0 0.0
  %413 = vmatprep.subr.mxu0 0.0
  %414 = vmatpush1.xpose.msra.mxu0 0.0
  %415 = vmatprep.subr.mxu0 0.0
  %416 = vmatpush1.xpose.msra.mxu0 0.0
  %417 = vmatprep.subr.mxu0 0.0
  %418 = vmatpush1.xpose.msra.mxu0 0.0
  %419 = vmatprep.subr.mxu0 0.0
  %420 = vmatpush1.xpose.msra.mxu0 0.0
  %421 = vmatprep.mubr.f32.mxu0 0.0
  %422 = vmatmul.mubr.f32.gmra.mrb[0].mxu0 %v349
  %v423 = vpop.f32.mrb[0].mxu0
  %v424 = vadd.f32 0.0, %v423
  %v425 = vpop.f32.mrb[0].mxu0
  %426 = vdwg.mxu0
  %v427 = vsel %vm178, %v424, -inf
  %428 = vmax.xlane.f32.xlu0 %v427
  %v429 = vpop.xlane.xlu0 %428
  %v430 = vsub.f32 %v424, %v429
  %v431 = vmul.f32 %v430, 1.442695
  %v432 = vpow.pop %v431
  %v433 = vsel %vm178, %v432, 0.0
  %434 = vadd.xlane.f32.xlu0 %v433
  %v435 = vpop.xlane.xlu0 %434
  %v436 = vrcp.pop %v435
  %v437 = vmul.f32 %v432, %v436
  %v439 = vsel %vm190, %v437, 0
  %v441 = vsel %vm194, %v272, 0
  %443 = vmatprep.subr.mxu0 0.0
  %444 = vmatpush1.msra.mxu0 %v271
  %445 = vmatprep.subr.mxu0 0.0
  %446 = vmatpush1.msra.mxu0 %v441
  %447 = vmatprep.subr.mxu0 0.0
  %448 = vmatpush1.msra.mxu0 0.0
  %449 = vmatprep.subr.mxu0 0.0
  %450 = vmatpush1.msra.mxu0 0.0
  %451 = vmatprep.subr.mxu0 0.0
  %452 = vmatpush1.msra.mxu0 0.0
  %453 = vmatprep.subr.mxu0 0.0
  %454 = vmatpush1.msra.mxu0 0.0
  %455 = vmatprep.subr.mxu0 0.0
  %456 = vmatpush1.msra.mxu0 0.0
  %457 = vmatprep.subr.mxu0 0.0
  %458 = vmatpush1.msra.mxu0 0.0
  %459 = vmatprep.subr.mxu0 0.0
  %460 = vmatpush1.msra.mxu0 0.0
  %461 = vmatprep.subr.mxu0 0.0
  %462 = vmatpush1.msra.mxu0 0.0
  %463 = vmatprep.subr.mxu0 0.0
  %464 = vmatpush1.msra.mxu0 0.0
  %465 = vmatprep.subr.mxu0 0.0
  %466 = vmatpush1.msra.mxu0 0.0
  %467 = vmatprep.subr.mxu0 0.0
  %468 = vmatpush1.msra.mxu0 0.0
  %469 = vmatprep.subr.mxu0 0.0
  %470 = vmatpush1.msra.mxu0 0.0
  %471 = vmatprep.subr.mxu0 0.0
  %472 = vmatpush1.msra.mxu0 0.0
  %473 = vmatprep.subr.mxu0 0.0
  %474 = vmatpush1.msra.mxu0 0.0
  %475 = vmatprep.subr.mxu0 0.0
  %476 = vmatpush1.msra.mxu0 0.0
  %477 = vmatprep.subr.mxu0 0.0
  %478 = vmatpush1.msra.mxu0 0.0
  %479 = vmatprep.subr.mxu0 0.0
  %480 = vmatpush1.msra.mxu0 0.0
  %481 = vmatprep.subr.mxu0 0.0
  %482 = vmatpush1.msra.mxu0 0.0
  %483 = vmatprep.subr.mxu0 0.0
  %484 = vmatpush1.msra.mxu0 0.0
  %485 = vmatprep.subr.mxu0 0.0
  %486 = vmatpush1.msra.mxu0 0.0
  %487 = vmatprep.subr.mxu0 0.0
  %488 = vmatpush1.msra.mxu0 0.0
  %489 = vmatprep.subr.mxu0 0.0
  %490 = vmatpush1.msra.mxu0 0.0
  %491 = vmatprep.subr.mxu0 0.0
  %492 = vmatpush1.msra.mxu0 0.0
  %493 = vmatprep.subr.mxu0 0.0
  %494 = vmatpush1.msra.mxu0 0.0
  %495 = vmatprep.subr.mxu0 0.0
  %496 = vmatpush1.msra.mxu0 0.0
  %497 = vmatprep.subr.mxu0 0.0
  %498 = vmatpush1.msra.mxu0 0.0
  %499 = vmatprep.subr.mxu0 0.0
  %500 = vmatpush1.msra.mxu0 0.0
  %501 = vmatprep.subr.mxu0 0.0
  %502 = vmatpush1.msra.mxu0 0.0
  %503 = vmatprep.subr.mxu0 0.0
  %504 = vmatpush1.msra.mxu0 0.0
  %505 = vmatprep.subr.mxu0 0.0
  %506 = vmatpush1.msra.mxu0 0.0
  %507 = vmatprep.mubr.f32.mxu0 0.0
  %508 = vmatmul.mubr.f32.gmra.mrb[0].mxu0 %v439
  %v509 = vpop.f32.mrb[0].mxu0
  %v510 = vadd.f32 0.0, %v509
  %v511 = vpop.f32.mrb[0].mxu0
  %512 = vdwg.mxu0
  %s513 = scalar_lea.vmem %s4, 4
  %514 = vst.msk [vmem:[%s513] sm:$0x7] %vm178, %v437
  %s515 = scalar_lea.vmem %s3, 4
  %516 = vst.msk [vmem:[%s515] sm:$0x7] %vm268, %v510
  // Predicated region
  $region14: #{tpu_custom_call.1} parent=0 // pred_check
    _
  $region15: #{tpu_custom_call.1} parent=0 // pred_check_branch
    %518 = sbr.rel (0) target = $region17
  $region16: #{tpu_custom_call.1} parent=0 // pred_region
    _
  $region17: #{tpu_custom_call.1} parent=0 // pred_fallthru
    _
  // Predicated region
  $region18: #{tpu_custom_call.1} parent=0 // pred_check
    _
  $region19: #{tpu_custom_call.1} parent=0 // pred_check_branch
    %520 = sbr.rel (0) target = $region21
  $region20: #{tpu_custom_call.1} parent=0 // pred_region
    _
  $region21: #{tpu_custom_call.1} parent=0 // pred_fallthru
    _
  // Predicated region
  $region22: #{tpu_custom_call.1} parent=0 // pred_check
    _
  $region23: #{tpu_custom_call.1} parent=0 // pred_check_branch
    %522 = sbr.rel (0) target = $region25
  $region24: #{tpu_custom_call.1} parent=0 // pred_region
    _
  $region25: #{tpu_custom_call.1} parent=0 // pred_fallthru
    _
  // Predicated region
  $region26: #{tpu_custom_call.1} parent=0 // pred_check
    _
  $region27: #{tpu_custom_call.1} parent=0 // pred_check_branch
    %524 = sbr.rel (0) target = $region29
  $region28: #{tpu_custom_call.1} parent=0 // pred_region
    _
  $region29: #{tpu_custom_call.1} parent=0 // pred_fallthru
    _

</llo_original>
